<compile_context>
chip_gen: v5e
topology: v5e:2x2
jax: 0.10.0
libtpu: 0.0.40
codegen_flags: <defaults>
</compile_context>

<pallas_src>
import jax
import jax.numpy as jnp
from jax.experimental import pallas as pl
from jax.experimental.pallas import tpu as pltpu


_SMALL_INPUT_BYTES = 1 << 20  # below this, kernel launch overhead dominates


def _stack_kernel(x_ref, o_ref):
    # x_ref: (TM, L) tile of the flattened input.
    # o_ref: (2, TM, L) tile of the flattened output (both stream slots).
    v = x_ref[...]
    o_ref[0] = v
    o_ref[1] = v
    # TODO(synk): optional manual VMEM->HBM DMA writeback (memory_space=pl.ANY
    # output) would cut the output double-buffer and allow ~3x larger tiles on
    # v7x; auto-vs-manual is within 2% at equal block size, so not done here.


def _sublane_multiple(dtype):
    # f32 -> 8, bf16 -> 16, int8/fp8 -> 32 (packed sublane rows).
    itemsize = jnp.dtype(dtype).itemsize
    return max(8, 32 // itemsize)


def _choose_lane_width(total):
    # Lane-dense last dim (multiple of 128). 512 is the measured sweet spot.
    for cand in (512, 1024, 2048, 256, 128):
        if total % cand == 0:
            return cand
    return None


def _vmem_capacity_bytes():
    # Trace-time hardware query; be conservative (v7x = 64 MiB) if unavailable.
    try:
        info = pltpu.get_tpu_info()
        cap = getattr(info, "vmem_capacity_bytes", None)
        if cap:
            return int(cap)
    except Exception:
        pass
    return 64 << 20


def _choose_tile_rows(m, lane, itemsize, sub, max_tile_bytes, min_steps):
    """Largest row tile that is a sublane multiple, divides m, fits the tile
    budget, and (when the shape allows) still yields >= min_steps grid steps so
    both v7x TensorCores get work. Returns None if no legal tile exists."""
    if m % sub != 0:
        return None
    row_bytes = lane * itemsize
    max_rows = max(sub, max_tile_bytes // row_bytes)
    q = m // sub
    divs = set()
    i = 1
    while i * i <= q:
        if q % i == 0:
            divs.add(i)
            divs.add(q // i)
        i += 1
    cands = sorted((d * sub for d in divs if d * sub <= max_rows), reverse=True)
    if not cands:
        return None
    target_steps = min(min_steps, m // sub)
    for tm in cands:
        if m // tm >= target_steps:
            return tm
    return cands[-1]


def distribute_main_stream(x):
    """Forward of DistributeMainStream: returns stack([x, x], axis=0)."""
    orig_shape = x.shape
    total = x.size
    itemsize = jnp.dtype(x.dtype).itemsize
    total_bytes = total * itemsize

    def _xla_fallback():
        return jnp.broadcast_to(x[None], (2,) + orig_shape)

    # Small-input fast path: plain broadcast is cheaper and fuses with consumers.
    if total_bytes < _SMALL_INPUT_BYTES:
        return _xla_fallback()

    lane = _choose_lane_width(total)
    if lane is None:
        # TODO(synk): pad / tail-loop path for element counts not divisible by 128.
        return _xla_fallback()

    m = total // lane
    sub = _sublane_multiple(x.dtype)

    # Generation-aware tile budget: 128 MiB-VMEM chips (v5e/v6e) -> 4 MiB input
    # tiles (~24 MiB pipelined footprint); v7x (64 MiB VMEM) -> 2 MiB tiles.
    vmem_cap = _vmem_capacity_bytes()
    max_tile_bytes = (4 << 20) if vmem_cap >= (96 << 20) else (2 << 20)

    # Aim for >= 4 grid steps (2 per TensorCore on v7x) when the array allows.
    tm = _choose_tile_rows(m, lane, itemsize, sub, max_tile_bytes, min_steps=4)
    if tm is None:
        # m not a multiple of the dtype sublane quantum: never fall back to a
        # full-array block (it could blow scoped VMEM for large inputs).
        return _xla_fallback()

    steps = m // tm
    if steps < 2:
        # Single-step grid: no pipelining / megacore benefit, XLA wins.
        return _xla_fallback()

    tile_in_bytes = tm * lane * itemsize
    # Pipelined footprint ~ 2x input tile + 2x (2x input) output tile; add headroom.
    vmem_limit = min(9 * tile_in_bytes + (2 << 20), (vmem_cap * 3) // 4)
    vmem_limit = max(int(vmem_limit), 16 << 20)

    x2 = x.reshape(m, lane)

    out2 = pl.pallas_call(
        _stack_kernel,
        out_shape=jax.ShapeDtypeStruct((2, m, lane), x.dtype),
        grid_spec=pltpu.PrefetchScalarGridSpec(
            num_scalar_prefetch=0,
            grid=(steps,),  # tile over the data; both streams written per step
            in_specs=[pl.BlockSpec((tm, lane), lambda i: (i, 0))],
            out_specs=pl.BlockSpec((2, tm, lane), lambda i: (0, i, 0)),
        ),
        compiler_params=pltpu.CompilerParams(
            dimension_semantics=("parallel",),  # tile axis -> both TCs on v7x
            vmem_limit_bytes=vmem_limit,
        ),
        cost_estimate=pl.CostEstimate(
            flops=0,
            transcendentals=0,
            bytes_accessed=3 * total_bytes,  # 1 read + 2 writes (traffic floor)
        ),
    )(x2)

    return out2.reshape((2,) + orig_shape)


if __name__ == "__main__":
    key = jax.random.PRNGKey(0)

    # Module-consistent small input (takes the XLA broadcast fast path).
    x_small = jax.random.normal(key, (2, 4, 16, 16), dtype=jnp.float32)
    y_small = jax.block_until_ready(distribute_main_stream(x_small))
    ref_small = jnp.stack([x_small, x_small], axis=0)
    assert y_small.shape == (2, 2, 4, 16, 16), y_small.shape
    assert y_small.dtype == x_small.dtype
    assert jnp.array_equal(y_small, ref_small), "mismatch vs reference (small)"

    # Larger input that exercises the Pallas kernel path (multi-step grid).
    x_big = jax.random.normal(key, (8, 16, 64, 64), dtype=jnp.float32)  # 2 MiB
    y_big = jax.block_until_ready(distribute_main_stream(x_big))
    ref_big = jnp.stack([x_big, x_big], axis=0)
    assert y_big.shape == (2, 8, 16, 64, 64), y_big.shape
    assert y_big.dtype == x_big.dtype
    assert jnp.array_equal(y_big, ref_big), "mismatch vs reference (large)"

    print("KERNEL_OK")
</pallas_src>

<mosaic_0001>
module attributes {stable_mosaic.version = 11 : i64} {
  func.func @_stack_kernel(%arg0: i32, %arg1: memref<256x512xf32, #tpu.memory_space<vmem>>, %arg2: memref<2x256x512xf32, #tpu.memory_space<vmem>>) attributes {dimension_semantics = [#tpu.dimension_semantics<parallel>], iteration_bounds = array<i64: 4>, scalar_prefetch = 0 : i64, scratch_operands = 0 : i64, tpu.core_type = #tpu.core_type<tc>, window_params = [{transform_indices = @transform_0, window_bounds = array<i64: 256, 512>}, {transform_indices = @transform_1, window_bounds = array<i64: 2, 256, 512>}]} {
    %c0 = arith.constant 0 : index
    %c0_0 = arith.constant 0 : index
    %0 = vector.load %arg1[%c0, %c0_0] : memref<256x512xf32, #tpu.memory_space<vmem>>, vector<256x512xf32>
    %c0_1 = arith.constant 0 : index
    %c0_2 = arith.constant 0 : index
    %c0_3 = arith.constant 0 : index
    %1 = vector.load %arg2[%c0_1, %c0_2, %c0_3] : memref<2x256x512xf32, #tpu.memory_space<vmem>>, vector<1x256x512xf32>
    %2 = vector.shape_cast %1 : vector<1x256x512xf32> to vector<256x512xf32>
    %3 = vector.shape_cast %0 : vector<256x512xf32> to vector<1x256x512xf32>
    tpu.vector_store %arg2[%c0_1, %c0_2, %c0_3], %3 {strides = array<i32>} : memref<2x256x512xf32, #tpu.memory_space<vmem>>, vector<1x256x512xf32>,
    %c1 = arith.constant 1 : index
    %c0_4 = arith.constant 0 : index
    %c0_5 = arith.constant 0 : index
    %4 = vector.load %arg2[%c1, %c0_4, %c0_5] : memref<2x256x512xf32, #tpu.memory_space<vmem>>, vector<1x256x512xf32>
    %5 = vector.shape_cast %4 : vector<1x256x512xf32> to vector<256x512xf32>
    %6 = vector.shape_cast %0 : vector<256x512xf32> to vector<1x256x512xf32>
    tpu.vector_store %arg2[%c1, %c0_4, %c0_5], %6 {strides = array<i32>} : memref<2x256x512xf32, #tpu.memory_space<vmem>>, vector<1x256x512xf32>,
    return
  }
  func.func @transform_0(%arg0: i32) -> (i32, i32) {
    %c0_i32 = arith.constant 0 : i32
    %c0_i32_0 = arith.constant 0 : i32
    return %arg0, %c0_i32 : i32, i32
  }
  func.func @transform_1(%arg0: i32) -> (i32, i32, i32) {
    %c0_i32 = arith.constant 0 : i32
    %c0_i32_0 = arith.constant 0 : i32
    %c0_i32_1 = arith.constant 0 : i32
    return %c0_i32, %arg0, %c0_i32_0 : i32, i32, i32
  }
}

</mosaic_0001>

<llo_original>
// kernel: tpu_custom_call.1
$region0: #{tpu_custom_call.1}
  #allocation0 [shape = 'u32[]', space=smem, size = 0x4, offset = 0x4, fixed_abs, tag = 'smem constant byte address 0x4 - core index']
  #allocation1 [shape = 'u32[72,128]{1,0:T(1,128)}', space=vmem, size = 0x9000, scoped, tag = 'internal scratch']
  #allocation6 [shape = 's32[]', space=sflag, size = 0x4, offset = 0, fixed_abs, tag = 'sflag constant byte address 0x0 - dummy sync flag']
  %s0 = inlined_call_operand.hbm [shape: f32[1024,512], index: 0, kind: input, shape index: {}]
  %s1 = inlined_call_operand.hbm [shape: f32[2,1024,512], index: 1, kind: output, shape index: {}]
  %s2 = sld [smem:[#allocation0]]
  $region41: #{tpu_custom_call.1} parent=0
    _
  %s4 = ssub.s32 1, %s2
  %s5 = scalar_select 0, %s4, %s2
  $region1: #{tpu_custom_call.1} parent=0
    #allocation2 [shape = 'u8[1048576]{0}', space=vmem, size = 0x100000, scoped, tag = 'input window, operand 0']
    #allocation3 [shape = 's32[2]{0}', space=sflag, size = 0x8, scoped, tag = 'scoped memory for tpu_custom_call.1']
    #allocation4 [shape = 's32[2]{0}', space=sflag, size = 0x8, scoped, tag = 'scoped memory for tpu_custom_call.1']
    #allocation5 [shape = 'u8[2097152]{0}', space=vmem, size = 0x200000, scoped, tag = 'output window, operand 0']
    %6 = vsyncpa [#allocation3], 0
    %s7 = scalar_lea.sflag [#allocation3], 1
    %8 = vsyncpa %s7, 0
    %9 = vsyncpa [#allocation4], 0
    %s10 = scalar_lea.sflag [#allocation4], 1
    %11 = vsyncpa %s10, 0
    loop: start=0, step=1, limit=6
    $region2: #{tpu_custom_call.1} parent=1 // loop_pre_header
      _
    $region3: #{tpu_custom_call.1} parent=1 // loop_header
      %s13 = sphi 0, %s17
      %p14 = scmp.ge.s32.totalorder %s13, 6
      %s23 = sphi 0, %s25
      %s26 = sphi 0, %s23
      %s27 = sphi 0, %s26
      %s43 = sphi 0, %s27
      %s49 = sphi 0, %s51
      %s52 = sphi 0, %s49
      %s53 = sphi 0, %s52
      %s69 = sphi 0, %s53
    $region4: #{tpu_custom_call.1} parent=1 // loop_header_branch
      %16 = sbr.rel (%p14) target = $region8
    $region5: #{tpu_custom_call.1} parent=1 // loop_body
      %s18 = ssub.s32 %s13, 1
      %s19 = ssub.s32 %s13, 2
      %s20 = sadd.s32 %s13, 1
      %s21 = ssub.s32 %s13, %s20
      %p22 = scmp.eq.s32.totalorder %s21, 0
      %s24 = sadd.s32 %s23, 1
      %s25 = scalar_select %p22, %s23, %s24
      %p28 = pneg %p22
      %p29 = scmp.eq.s32.totalorder %s13, 3
      %p30 = por %p28, %p29
      %p31 = scmp.ne.s32.totalorder %s23, %s26
      %p32 = scmp.eq.s32.totalorder %s13, 0
      %p33 = por %p31, %p32
      %p34 = scmp.ne.s32.totalorder %s23, %s26
      %p35 = scmp.eq.s32.totalorder %s18, 3
      %p36 = por %p34, %p35
      %p37 = scmp.ne.s32.totalorder %s26, %s27
      %p38 = scmp.eq.s32.totalorder %s18, 0
      %p39 = por %p37, %p38
      %p40 = scmp.ne.s32.totalorder %s26, %s27
      %p41 = scmp.eq.s32.totalorder %s19, 3
      %p42 = por %p40, %p41
      %p44 = scmp.ne.s32.totalorder %s27, %s43
      %p45 = scmp.eq.s32.totalorder %s19, 0
      %p46 = por %p44, %p45
      %s47 = ssub.s32 %s13, %s20
      %p48 = scmp.eq.s32.totalorder %s47, 0
      %s50 = sadd.s32 %s49, 1
      %s51 = scalar_select %p48, %s49, %s50
      %p54 = pneg %p48
      %p55 = scmp.eq.s32.totalorder %s13, 3
      %p56 = por %p54, %p55
      %p57 = scmp.ne.s32.totalorder %s49, %s52
      %p58 = scmp.eq.s32.totalorder %s13, 0
      %p59 = por %p57, %p58
      %p60 = scmp.ne.s32.totalorder %s49, %s52
      %p61 = scmp.eq.s32.totalorder %s18, 3
      %p62 = por %p60, %p61
      %p63 = scmp.ne.s32.totalorder %s52, %s53
      %p64 = scmp.eq.s32.totalorder %s18, 0
      %p65 = por %p63, %p64
      %p66 = scmp.ne.s32.totalorder %s52, %s53
      %p67 = scmp.eq.s32.totalorder %s19, 3
      %p68 = por %p66, %p67
      %p70 = scmp.ne.s32.totalorder %s53, %s69
      %p71 = scmp.eq.s32.totalorder %s19, 0
      %p72 = por %p70, %p71
      %p73 = scmp.le.s32.totalorder 1, %s13
      %p74 = scmp.lt.s32.totalorder %s13, 5
      %p75 = pnand %p73, %p74
      %p76 = pneg %p75
      // Predicated region
      $region9: #{tpu_custom_call.1} parent=5 // pred_check
        _
      $region10: #{tpu_custom_call.1} parent=5 // pred_check_branch
        %78 = sbr.rel (%p75) target = $region12
      $region11: #{tpu_custom_call.1} parent=5 // pred_region
        %s79 = ssub.s32 %s13, 1
      $region12: #{tpu_custom_call.1} parent=5 // pred_fallthru
        _
      %p80 = scmp.lt.s32.totalorder %s13, 4
      // Predicated region
      $region13: #{tpu_custom_call.1} parent=5 // pred_check
        %p81 = pneg %p80
      $region14: #{tpu_custom_call.1} parent=5 // pred_check_branch
        %83 = sbr.rel (%p81) target = $region16
      $region15: #{tpu_custom_call.1} parent=5 // pred_region
        // Predicated region
        $region17: #{tpu_custom_call.1} parent=15 // pred_check
          %p84 = pneg %p33
        $region18: #{tpu_custom_call.1} parent=15 // pred_check_branch
          %86 = sbr.rel (%p84) target = $region20
        $region19: #{tpu_custom_call.1} parent=15 // pred_region
          %s87 = sand.u32 %s23, 1
          %s88 = scalar_lea.sflag [#allocation3], %s87
          %s89 = sand.u32 %s23, 1
          %s90 = smul.addr %s89, 1024
          %s91 = scalar_lea.vmem [#allocation2], %s90
          %s92 = smul.u32 32, %s13
          %94 = vsyncadd %s88, 0
          %s95 = smul.addr %s92, 4
          %s96 = smul.addr %s95, 8
          %s97 = scalar_lea.hbm %s0, %s96
          %s98 = sshll.u32 %s97, 4
          %s99 = int_to_ptr.hbm [resolvable:$true] %s98
          %s100 = sshll.u32 %s91, 4
          %s101 = int_to_ptr.vmem [resolvable:$true] %s100
          %106 = dma.hbm_to_vmem [thread:$0]  %s99, 16384, %s101, %s88, 512, 512, 32
        $region20: #{tpu_custom_call.1} parent=15 // pred_fallthru
          _
      $region16: #{tpu_custom_call.1} parent=5 // pred_fallthru
        _
      %p107 = scmp.le.s32.totalorder 1, %s13
      %p108 = scmp.lt.s32.totalorder %s13, 5
      %p109 = pnand %p107, %p108
      %p110 = pneg %p109
      // Predicated region
      $region21: #{tpu_custom_call.1} parent=5 // pred_check
        _
      $region22: #{tpu_custom_call.1} parent=5 // pred_check_branch
        %112 = sbr.rel (%p109) target = $region24
      $region23: #{tpu_custom_call.1} parent=5 // pred_region
        %s113 = ssub.s32 %s13, 1
        %s114 = sand.u32 %s26, 1
        %s115 = scalar_lea.sflag [#allocation3], %s114
        %s116 = sand.u32 %s26, 1
        %s117 = smul.addr %s116, 1024
        %s118 = scalar_lea.vmem [#allocation2], %s117
        // Predicated region
        $region25: #{tpu_custom_call.1} parent=23 // pred_check
          %p119 = pneg %p39
        $region26: #{tpu_custom_call.1} parent=23 // pred_check_branch
          %121 = sbr.rel (%p119) target = $region28
        $region27: #{tpu_custom_call.1} parent=23 // pred_region
          %123 = dma.done %s115, 16384
        $region28: #{tpu_custom_call.1} parent=23 // pred_fallthru
          _
        %s124 = sand.u32 %s26, 1
        %s125 = scalar_lea.sflag [#allocation3], %s124
        %s126 = sand.u32 %s26, 1
        %s127 = smul.addr %s126, 1024
        %s128 = scalar_lea.vmem [#allocation2], %s127
        %p129 = pneg %p39
        %p130 = pneg %p36
        %p131 = pneg %p65
        %p132 = pneg %p62
        %s133 = sand.u32 %s52, 1
        %s134 = scalar_lea.sflag [#allocation4], %s133
        %s135 = sand.u32 %s52, 1
        %s136 = smul.addr %s135, 2048
        %s137 = scalar_lea.vmem [#allocation5], %s136
        %s138 = smul.u32 32, %s18
        %s139 = smul.u32 32, %s18
        %v140 = vld [vmem:[%s118] sm:$0xff]
        %v141 = vld [vmem:[%s118 + $0x8] sm:$0xff]
        %v142 = vld [vmem:[%s118 + $0x10] sm:$0xff]
        %v143 = vld [vmem:[%s118 + $0x18] sm:$0xff]
        %v144 = vld [vmem:[%s118 + $0x20] sm:$0xff]
        %v145 = vld [vmem:[%s118 + $0x28] sm:$0xff]
        %v146 = vld [vmem:[%s118 + $0x30] sm:$0xff]
        %v147 = vld [vmem:[%s118 + $0x38] sm:$0xff]
        %v148 = vld [vmem:[%s118 + $0x40] sm:$0xff]
        %v149 = vld [vmem:[%s118 + $0x48] sm:$0xff]
        %v150 = vld [vmem:[%s118 + $0x50] sm:$0xff]
        %v151 = vld [vmem:[%s118 + $0x58] sm:$0xff]
        %v152 = vld [vmem:[%s118 + $0x60] sm:$0xff]
        %v153 = vld [vmem:[%s118 + $0x68] sm:$0xff]
        %v154 = vld [vmem:[%s118 + $0x70] sm:$0xff]
        %v155 = vld [vmem:[%s118 + $0x78] sm:$0xff]
        %v156 = vld [vmem:[%s118 + $0x80] sm:$0xff]
        %v157 = vld [vmem:[%s118 + $0x88] sm:$0xff]
        %v158 = vld [vmem:[%s118 + $0x90] sm:$0xff]
        %v159 = vld [vmem:[%s118 + $0x98] sm:$0xff]
        %v160 = vld [vmem:[%s118 + $0xa0] sm:$0xff]
        %v161 = vld [vmem:[%s118 + $0xa8] sm:$0xff]
        %v162 = vld [vmem:[%s118 + $0xb0] sm:$0xff]
        %v163 = vld [vmem:[%s118 + $0xb8] sm:$0xff]
        %v164 = vld [vmem:[%s118 + $0xc0] sm:$0xff]
        %v165 = vld [vmem:[%s118 + $0xc8] sm:$0xff]
        %v166 = vld [vmem:[%s118 + $0xd0] sm:$0xff]
        %v167 = vld [vmem:[%s118 + $0xd8] sm:$0xff]
        %v168 = vld [vmem:[%s118 + $0xe0] sm:$0xff]
        %v169 = vld [vmem:[%s118 + $0xe8] sm:$0xff]
        %v170 = vld [vmem:[%s118 + $0xf0] sm:$0xff]
        %v171 = vld [vmem:[%s118 + $0xf8] sm:$0xff]
        %v172 = vld [vmem:[%s118 + $0x100] sm:$0xff]
        %v173 = vld [vmem:[%s118 + $0x108] sm:$0xff]
        %v174 = vld [vmem:[%s118 + $0x110] sm:$0xff]
        %v175 = vld [vmem:[%s118 + $0x118] sm:$0xff]
        %v176 = vld [vmem:[%s118 + $0x120] sm:$0xff]
        %v177 = vld [vmem:[%s118 + $0x128] sm:$0xff]
        %v178 = vld [vmem:[%s118 + $0x130] sm:$0xff]
        %v179 = vld [vmem:[%s118 + $0x138] sm:$0xff]
        %v180 = vld [vmem:[%s118 + $0x140] sm:$0xff]
        %v181 = vld [vmem:[%s118 + $0x148] sm:$0xff]
        %v182 = vld [vmem:[%s118 + $0x150] sm:$0xff]
        %v183 = vld [vmem:[%s118 + $0x158] sm:$0xff]
        %v184 = vld [vmem:[%s118 + $0x160] sm:$0xff]
        %v185 = vld [vmem:[%s118 + $0x168] sm:$0xff]
        %v186 = vld [vmem:[%s118 + $0x170] sm:$0xff]
        %v187 = vld [vmem:[%s118 + $0x178] sm:$0xff]
        %v188 = vld [vmem:[%s118 + $0x180] sm:$0xff]
        %v189 = vld [vmem:[%s118 + $0x188] sm:$0xff]
        %v190 = vld [vmem:[%s118 + $0x190] sm:$0xff]
        %v191 = vld [vmem:[%s118 + $0x198] sm:$0xff]
        %v192 = vld [vmem:[%s118 + $0x1a0] sm:$0xff]
        %v193 = vld [vmem:[%s118 + $0x1a8] sm:$0xff]
        %v194 = vld [vmem:[%s118 + $0x1b0] sm:$0xff]
        %v195 = vld [vmem:[%s118 + $0x1b8] sm:$0xff]
        %v196 = vld [vmem:[%s118 + $0x1c0] sm:$0xff]
        %v197 = vld [vmem:[%s118 + $0x1c8] sm:$0xff]
        %v198 = vld [vmem:[%s118 + $0x1d0] sm:$0xff]
        %v199 = vld [vmem:[%s118 + $0x1d8] sm:$0xff]
        %v200 = vld [vmem:[%s118 + $0x1e0] sm:$0xff]
        %v201 = vld [vmem:[%s118 + $0x1e8] sm:$0xff]
        %v202 = vld [vmem:[%s118 + $0x1f0] sm:$0xff]
        %v203 = vld [vmem:[%s118 + $0x1f8] sm:$0xff]
        %v204 = vld [vmem:[%s118 + $0x200] sm:$0xff]
        %v205 = vld [vmem:[%s118 + $0x208] sm:$0xff]
        %v206 = vld [vmem:[%s118 + $0x210] sm:$0xff]
        %v207 = vld [vmem:[%s118 + $0x218] sm:$0xff]
        %v208 = vld [vmem:[%s118 + $0x220] sm:$0xff]
        %v209 = vld [vmem:[%s118 + $0x228] sm:$0xff]
        %v210 = vld [vmem:[%s118 + $0x230] sm:$0xff]
        %v211 = vld [vmem:[%s118 + $0x238] sm:$0xff]
        %v212 = vld [vmem:[%s118 + $0x240] sm:$0xff]
        %v213 = vld [vmem:[%s118 + $0x248] sm:$0xff]
        %v214 = vld [vmem:[%s118 + $0x250] sm:$0xff]
        %v215 = vld [vmem:[%s118 + $0x258] sm:$0xff]
        %v216 = vld [vmem:[%s118 + $0x260] sm:$0xff]
        %v217 = vld [vmem:[%s118 + $0x268] sm:$0xff]
        %v218 = vld [vmem:[%s118 + $0x270] sm:$0xff]
        %v219 = vld [vmem:[%s118 + $0x278] sm:$0xff]
        %v220 = vld [vmem:[%s118 + $0x280] sm:$0xff]
        %v221 = vld [vmem:[%s118 + $0x288] sm:$0xff]
        %v222 = vld [vmem:[%s118 + $0x290] sm:$0xff]
        %v223 = vld [vmem:[%s118 + $0x298] sm:$0xff]
        %v224 = vld [vmem:[%s118 + $0x2a0] sm:$0xff]
        %v225 = vld [vmem:[%s118 + $0x2a8] sm:$0xff]
        %v226 = vld [vmem:[%s118 + $0x2b0] sm:$0xff]
        %v227 = vld [vmem:[%s118 + $0x2b8] sm:$0xff]
        %v228 = vld [vmem:[%s118 + $0x2c0] sm:$0xff]
        %v229 = vld [vmem:[%s118 + $0x2c8] sm:$0xff]
        %v230 = vld [vmem:[%s118 + $0x2d0] sm:$0xff]
        %v231 = vld [vmem:[%s118 + $0x2d8] sm:$0xff]
        %v232 = vld [vmem:[%s118 + $0x2e0] sm:$0xff]
        %v233 = vld [vmem:[%s118 + $0x2e8] sm:$0xff]
        %v234 = vld [vmem:[%s118 + $0x2f0] sm:$0xff]
        %v235 = vld [vmem:[%s118 + $0x2f8] sm:$0xff]
        %v236 = vld [vmem:[%s118 + $0x300] sm:$0xff]
        %v237 = vld [vmem:[%s118 + $0x308] sm:$0xff]
        %v238 = vld [vmem:[%s118 + $0x310] sm:$0xff]
        %v239 = vld [vmem:[%s118 + $0x318] sm:$0xff]
        %v240 = vld [vmem:[%s118 + $0x320] sm:$0xff]
        %v241 = vld [vmem:[%s118 + $0x328] sm:$0xff]
        %v242 = vld [vmem:[%s118 + $0x330] sm:$0xff]
        %v243 = vld [vmem:[%s118 + $0x338] sm:$0xff]
        %v244 = vld [vmem:[%s118 + $0x340] sm:$0xff]
        %v245 = vld [vmem:[%s118 + $0x348] sm:$0xff]
        %v246 = vld [vmem:[%s118 + $0x350] sm:$0xff]
        %v247 = vld [vmem:[%s118 + $0x358] sm:$0xff]
        %v248 = vld [vmem:[%s118 + $0x360] sm:$0xff]
        %v249 = vld [vmem:[%s118 + $0x368] sm:$0xff]
        %v250 = vld [vmem:[%s118 + $0x370] sm:$0xff]
        %v251 = vld [vmem:[%s118 + $0x378] sm:$0xff]
        %v252 = vld [vmem:[%s118 + $0x380] sm:$0xff]
        %v253 = vld [vmem:[%s118 + $0x388] sm:$0xff]
        %v254 = vld [vmem:[%s118 + $0x390] sm:$0xff]
        %v255 = vld [vmem:[%s118 + $0x398] sm:$0xff]
        %v256 = vld [vmem:[%s118 + $0x3a0] sm:$0xff]
        %v257 = vld [vmem:[%s118 + $0x3a8] sm:$0xff]
        %v258 = vld [vmem:[%s118 + $0x3b0] sm:$0xff]
        %v259 = vld [vmem:[%s118 + $0x3b8] sm:$0xff]
        %v260 = vld [vmem:[%s118 + $0x3c0] sm:$0xff]
        %v261 = vld [vmem:[%s118 + $0x3c8] sm:$0xff]
        %v262 = vld [vmem:[%s118 + $0x3d0] sm:$0xff]
        %v263 = vld [vmem:[%s118 + $0x3d8] sm:$0xff]
        %v264 = vld [vmem:[%s118 + $0x3e0] sm:$0xff]
        %v265 = vld [vmem:[%s118 + $0x3e8] sm:$0xff]
        %v266 = vld [vmem:[%s118 + $0x3f0] sm:$0xff]
        %v267 = vld [vmem:[%s118 + $0x3f8] sm:$0xff]
        %268 = vst [vmem:[%s137] sm:$0xff] %v140
        %269 = vst [vmem:[%s137 + $0x8] sm:$0xff] %v141
        %270 = vst [vmem:[%s137 + $0x10] sm:$0xff] %v142
        %271 = vst [vmem:[%s137 + $0x18] sm:$0xff] %v143
        %272 = vst [vmem:[%s137 + $0x20] sm:$0xff] %v144
        %273 = vst [vmem:[%s137 + $0x28] sm:$0xff] %v145
        %274 = vst [vmem:[%s137 + $0x30] sm:$0xff] %v146
        %275 = vst [vmem:[%s137 + $0x38] sm:$0xff] %v147
        %276 = vst [vmem:[%s137 + $0x40] sm:$0xff] %v148
        %277 = vst [vmem:[%s137 + $0x48] sm:$0xff] %v149
        %278 = vst [vmem:[%s137 + $0x50] sm:$0xff] %v150
        %279 = vst [vmem:[%s137 + $0x58] sm:$0xff] %v151
        %280 = vst [vmem:[%s137 + $0x60] sm:$0xff] %v152
        %281 = vst [vmem:[%s137 + $0x68] sm:$0xff] %v153
        %282 = vst [vmem:[%s137 + $0x70] sm:$0xff] %v154
        %283 = vst [vmem:[%s137 + $0x78] sm:$0xff] %v155
        %284 = vst [vmem:[%s137 + $0x80] sm:$0xff] %v156
        %285 = vst [vmem:[%s137 + $0x88] sm:$0xff] %v157
        %286 = vst [vmem:[%s137 + $0x90] sm:$0xff] %v158
        %287 = vst [vmem:[%s137 + $0x98] sm:$0xff] %v159
        %288 = vst [vmem:[%s137 + $0xa0] sm:$0xff] %v160
        %289 = vst [vmem:[%s137 + $0xa8] sm:$0xff] %v161
        %290 = vst [vmem:[%s137 + $0xb0] sm:$0xff] %v162
        %291 = vst [vmem:[%s137 + $0xb8] sm:$0xff] %v163
        %292 = vst [vmem:[%s137 + $0xc0] sm:$0xff] %v164
        %293 = vst [vmem:[%s137 + $0xc8] sm:$0xff] %v165
        %294 = vst [vmem:[%s137 + $0xd0] sm:$0xff] %v166
        %295 = vst [vmem:[%s137 + $0xd8] sm:$0xff] %v167
        %296 = vst [vmem:[%s137 + $0xe0] sm:$0xff] %v168
        %297 = vst [vmem:[%s137 + $0xe8] sm:$0xff] %v169
        %298 = vst [vmem:[%s137 + $0xf0] sm:$0xff] %v170
        %299 = vst [vmem:[%s137 + $0xf8] sm:$0xff] %v171
        %300 = vst [vmem:[%s137 + $0x100] sm:$0xff] %v172
        %301 = vst [vmem:[%s137 + $0x108] sm:$0xff] %v173
        %302 = vst [vmem:[%s137 + $0x110] sm:$0xff] %v174
        %303 = vst [vmem:[%s137 + $0x118] sm:$0xff] %v175
        %304 = vst [vmem:[%s137 + $0x120] sm:$0xff] %v176
        %305 = vst [vmem:[%s137 + $0x128] sm:$0xff] %v177
        %306 = vst [vmem:[%s137 + $0x130] sm:$0xff] %v178
        %307 = vst [vmem:[%s137 + $0x138] sm:$0xff] %v179
        %308 = vst [vmem:[%s137 + $0x140] sm:$0xff] %v180
        %309 = vst [vmem:[%s137 + $0x148] sm:$0xff] %v181
        %310 = vst [vmem:[%s137 + $0x150] sm:$0xff] %v182
        %311 = vst [vmem:[%s137 + $0x158] sm:$0xff] %v183
        %312 = vst [vmem:[%s137 + $0x160] sm:$0xff] %v184
        %313 = vst [vmem:[%s137 + $0x168] sm:$0xff] %v185
        %314 = vst [vmem:[%s137 + $0x170] sm:$0xff] %v186
        %315 = vst [vmem:[%s137 + $0x178] sm:$0xff] %v187
        %316 = vst [vmem:[%s137 + $0x180] sm:$0xff] %v188
        %317 = vst [vmem:[%s137 + $0x188] sm:$0xff] %v189
        %318 = vst [vmem:[%s137 + $0x190] sm:$0xff] %v190
        %319 = vst [vmem:[%s137 + $0x198] sm:$0xff] %v191
        %320 = vst [vmem:[%s137 + $0x1a0] sm:$0xff] %v192
        %321 = vst [vmem:[%s137 + $0x1a8] sm:$0xff] %v193
        %322 = vst [vmem:[%s137 + $0x1b0] sm:$0xff] %v194
        %323 = vst [vmem:[%s137 + $0x1b8] sm:$0xff] %v195
        %324 = vst [vmem:[%s137 + $0x1c0] sm:$0xff] %v196
        %325 = vst [vmem:[%s137 + $0x1c8] sm:$0xff] %v197
        %326 = vst [vmem:[%s137 + $0x1d0] sm:$0xff] %v198
        %327 = vst [vmem:[%s137 + $0x1d8] sm:$0xff] %v199
        %328 = vst [vmem:[%s137 + $0x1e0] sm:$0xff] %v200
        %329 = vst [vmem:[%s137 + $0x1e8] sm:$0xff] %v201
        %330 = vst [vmem:[%s137 + $0x1f0] sm:$0xff] %v202
        %331 = vst [vmem:[%s137 + $0x1f8] sm:$0xff] %v203
        %332 = vst [vmem:[%s137 + $0x200] sm:$0xff] %v204
        %333 = vst [vmem:[%s137 + $0x208] sm:$0xff] %v205
        %334 = vst [vmem:[%s137 + $0x210] sm:$0xff] %v206
        %335 = vst [vmem:[%s137 + $0x218] sm:$0xff] %v207
        %336 = vst [vmem:[%s137 + $0x220] sm:$0xff] %v208
        %337 = vst [vmem:[%s137 + $0x228] sm:$0xff] %v209
        %338 = vst [vmem:[%s137 + $0x230] sm:$0xff] %v210
        %339 = vst [vmem:[%s137 + $0x238] sm:$0xff] %v211
        %340 = vst [vmem:[%s137 + $0x240] sm:$0xff] %v212
        %341 = vst [vmem:[%s137 + $0x248] sm:$0xff] %v213
        %342 = vst [vmem:[%s137 + $0x250] sm:$0xff] %v214
        %343 = vst [vmem:[%s137 + $0x258] sm:$0xff] %v215
        %344 = vst [vmem:[%s137 + $0x260] sm:$0xff] %v216
        %345 = vst [vmem:[%s137 + $0x268] sm:$0xff] %v217
        %346 = vst [vmem:[%s137 + $0x270] sm:$0xff] %v218
        %347 = vst [vmem:[%s137 + $0x278] sm:$0xff] %v219
        %348 = vst [vmem:[%s137 + $0x280] sm:$0xff] %v220
        %349 = vst [vmem:[%s137 + $0x288] sm:$0xff] %v221
        %350 = vst [vmem:[%s137 + $0x290] sm:$0xff] %v222
        %351 = vst [vmem:[%s137 + $0x298] sm:$0xff] %v223
        %352 = vst [vmem:[%s137 + $0x2a0] sm:$0xff] %v224
        %353 = vst [vmem:[%s137 + $0x2a8] sm:$0xff] %v225
        %354 = vst [vmem:[%s137 + $0x2b0] sm:$0xff] %v226
        %355 = vst [vmem:[%s137 + $0x2b8] sm:$0xff] %v227
        %356 = vst [vmem:[%s137 + $0x2c0] sm:$0xff] %v228
        %357 = vst [vmem:[%s137 + $0x2c8] sm:$0xff] %v229
        %358 = vst [vmem:[%s137 + $0x2d0] sm:$0xff] %v230
        %359 = vst [vmem:[%s137 + $0x2d8] sm:$0xff] %v231
        %360 = vst [vmem:[%s137 + $0x2e0] sm:$0xff] %v232
        %361 = vst [vmem:[%s137 + $0x2e8] sm:$0xff] %v233
        %362 = vst [vmem:[%s137 + $0x2f0] sm:$0xff] %v234
        %363 = vst [vmem:[%s137 + $0x2f8] sm:$0xff] %v235
        %364 = vst [vmem:[%s137 + $0x300] sm:$0xff] %v236
        %365 = vst [vmem:[%s137 + $0x308] sm:$0xff] %v237
        %366 = vst [vmem:[%s137 + $0x310] sm:$0xff] %v238
        %367 = vst [vmem:[%s137 + $0x318] sm:$0xff] %v239
        %368 = vst [vmem:[%s137 + $0x320] sm:$0xff] %v240
        %369 = vst [vmem:[%s137 + $0x328] sm:$0xff] %v241
        %370 = vst [vmem:[%s137 + $0x330] sm:$0xff] %v242
        %371 = vst [vmem:[%s137 + $0x338] sm:$0xff] %v243
        %372 = vst [vmem:[%s137 + $0x340] sm:$0xff] %v244
        %373 = vst [vmem:[%s137 + $0x348] sm:$0xff] %v245
        %374 = vst [vmem:[%s137 + $0x350] sm:$0xff] %v246
        %375 = vst [vmem:[%s137 + $0x358] sm:$0xff] %v247
        %376 = vst [vmem:[%s137 + $0x360] sm:$0xff] %v248
        %377 = vst [vmem:[%s137 + $0x368] sm:$0xff] %v249
        %378 = vst [vmem:[%s137 + $0x370] sm:$0xff] %v250
        %379 = vst [vmem:[%s137 + $0x378] sm:$0xff] %v251
        %380 = vst [vmem:[%s137 + $0x380] sm:$0xff] %v252
        %381 = vst [vmem:[%s137 + $0x388] sm:$0xff] %v253
        %382 = vst [vmem:[%s137 + $0x390] sm:$0xff] %v254
        %383 = vst [vmem:[%s137 + $0x398] sm:$0xff] %v255
        %384 = vst [vmem:[%s137 + $0x3a0] sm:$0xff] %v256
        %385 = vst [vmem:[%s137 + $0x3a8] sm:$0xff] %v257
        %386 = vst [vmem:[%s137 + $0x3b0] sm:$0xff] %v258
        %387 = vst [vmem:[%s137 + $0x3b8] sm:$0xff] %v259
        %388 = vst [vmem:[%s137 + $0x3c0] sm:$0xff] %v260
        %389 = vst [vmem:[%s137 + $0x3c8] sm:$0xff] %v261
        %390 = vst [vmem:[%s137 + $0x3d0] sm:$0xff] %v262
        %391 = vst [vmem:[%s137 + $0x3d8] sm:$0xff] %v263
        %392 = vst [vmem:[%s137 + $0x3e0] sm:$0xff] %v264
        %393 = vst [vmem:[%s137 + $0x3e8] sm:$0xff] %v265
        %394 = vst [vmem:[%s137 + $0x3f0] sm:$0xff] %v266
        %395 = vst [vmem:[%s137 + $0x3f8] sm:$0xff] %v267
        %s396 = scalar_lea.vmem %s137, 1024 [#allocation5]
        %397 = vst [vmem:[%s396] sm:$0xff] %v140
        %398 = vst [vmem:[%s396 + $0x8] sm:$0xff] %v141
        %399 = vst [vmem:[%s396 + $0x10] sm:$0xff] %v142
        %400 = vst [vmem:[%s396 + $0x18] sm:$0xff] %v143
        %401 = vst [vmem:[%s396 + $0x20] sm:$0xff] %v144
        %402 = vst [vmem:[%s396 + $0x28] sm:$0xff] %v145
        %403 = vst [vmem:[%s396 + $0x30] sm:$0xff] %v146
        %404 = vst [vmem:[%s396 + $0x38] sm:$0xff] %v147
        %405 = vst [vmem:[%s396 + $0x40] sm:$0xff] %v148
        %406 = vst [vmem:[%s396 + $0x48] sm:$0xff] %v149
        %407 = vst [vmem:[%s396 + $0x50] sm:$0xff] %v150
        %408 = vst [vmem:[%s396 + $0x58] sm:$0xff] %v151
        %409 = vst [vmem:[%s396 + $0x60] sm:$0xff] %v152
        %410 = vst [vmem:[%s396 + $0x68] sm:$0xff] %v153
        %411 = vst [vmem:[%s396 + $0x70] sm:$0xff] %v154
        %412 = vst [vmem:[%s396 + $0x78] sm:$0xff] %v155
        %413 = vst [vmem:[%s396 + $0x80] sm:$0xff] %v156
        %414 = vst [vmem:[%s396 + $0x88] sm:$0xff] %v157
        %415 = vst [vmem:[%s396 + $0x90] sm:$0xff] %v158
        %416 = vst [vmem:[%s396 + $0x98] sm:$0xff] %v159
        %417 = vst [vmem:[%s396 + $0xa0] sm:$0xff] %v160
        %418 = vst [vmem:[%s396 + $0xa8] sm:$0xff] %v161
        %419 = vst [vmem:[%s396 + $0xb0] sm:$0xff] %v162
        %420 = vst [vmem:[%s396 + $0xb8] sm:$0xff] %v163
        %421 = vst [vmem:[%s396 + $0xc0] sm:$0xff] %v164
        %422 = vst [vmem:[%s396 + $0xc8] sm:$0xff] %v165
        %423 = vst [vmem:[%s396 + $0xd0] sm:$0xff] %v166
        %424 = vst [vmem:[%s396 + $0xd8] sm:$0xff] %v167
        %425 = vst [vmem:[%s396 + $0xe0] sm:$0xff] %v168
        %426 = vst [vmem:[%s396 + $0xe8] sm:$0xff] %v169
        %427 = vst [vmem:[%s396 + $0xf0] sm:$0xff] %v170
        %428 = vst [vmem:[%s396 + $0xf8] sm:$0xff] %v171
        %429 = vst [vmem:[%s396 + $0x100] sm:$0xff] %v172
        %430 = vst [vmem:[%s396 + $0x108] sm:$0xff] %v173
        %431 = vst [vmem:[%s396 + $0x110] sm:$0xff] %v174
        %432 = vst [vmem:[%s396 + $0x118] sm:$0xff] %v175
        %433 = vst [vmem:[%s396 + $0x120] sm:$0xff] %v176
        %434 = vst [vmem:[%s396 + $0x128] sm:$0xff] %v177
        %435 = vst [vmem:[%s396 + $0x130] sm:$0xff] %v178
        %436 = vst [vmem:[%s396 + $0x138] sm:$0xff] %v179
        %437 = vst [vmem:[%s396 + $0x140] sm:$0xff] %v180
        %438 = vst [vmem:[%s396 + $0x148] sm:$0xff] %v181
        %439 = vst [vmem:[%s396 + $0x150] sm:$0xff] %v182
        %440 = vst [vmem:[%s396 + $0x158] sm:$0xff] %v183
        %441 = vst [vmem:[%s396 + $0x160] sm:$0xff] %v184
        %442 = vst [vmem:[%s396 + $0x168] sm:$0xff] %v185
        %443 = vst [vmem:[%s396 + $0x170] sm:$0xff] %v186
        %444 = vst [vmem:[%s396 + $0x178] sm:$0xff] %v187
        %445 = vst [vmem:[%s396 + $0x180] sm:$0xff] %v188
        %446 = vst [vmem:[%s396 + $0x188] sm:$0xff] %v189
        %447 = vst [vmem:[%s396 + $0x190] sm:$0xff] %v190
        %448 = vst [vmem:[%s396 + $0x198] sm:$0xff] %v191
        %449 = vst [vmem:[%s396 + $0x1a0] sm:$0xff] %v192
        %450 = vst [vmem:[%s396 + $0x1a8] sm:$0xff] %v193
        %451 = vst [vmem:[%s396 + $0x1b0] sm:$0xff] %v194
        %452 = vst [vmem:[%s396 + $0x1b8] sm:$0xff] %v195
        %453 = vst [vmem:[%s396 + $0x1c0] sm:$0xff] %v196
        %454 = vst [vmem:[%s396 + $0x1c8] sm:$0xff] %v197
        %455 = vst [vmem:[%s396 + $0x1d0] sm:$0xff] %v198
        %456 = vst [vmem:[%s396 + $0x1d8] sm:$0xff] %v199
        %457 = vst [vmem:[%s396 + $0x1e0] sm:$0xff] %v200
        %458 = vst [vmem:[%s396 + $0x1e8] sm:$0xff] %v201
        %459 = vst [vmem:[%s396 + $0x1f0] sm:$0xff] %v202
        %460 = vst [vmem:[%s396 + $0x1f8] sm:$0xff] %v203
        %461 = vst [vmem:[%s396 + $0x200] sm:$0xff] %v204
        %462 = vst [vmem:[%s396 + $0x208] sm:$0xff] %v205
        %463 = vst [vmem:[%s396 + $0x210] sm:$0xff] %v206
        %464 = vst [vmem:[%s396 + $0x218] sm:$0xff] %v207
        %465 = vst [vmem:[%s396 + $0x220] sm:$0xff] %v208
        %466 = vst [vmem:[%s396 + $0x228] sm:$0xff] %v209
        %467 = vst [vmem:[%s396 + $0x230] sm:$0xff] %v210
        %468 = vst [vmem:[%s396 + $0x238] sm:$0xff] %v211
        %469 = vst [vmem:[%s396 + $0x240] sm:$0xff] %v212
        %470 = vst [vmem:[%s396 + $0x248] sm:$0xff] %v213
        %471 = vst [vmem:[%s396 + $0x250] sm:$0xff] %v214
        %472 = vst [vmem:[%s396 + $0x258] sm:$0xff] %v215
        %473 = vst [vmem:[%s396 + $0x260] sm:$0xff] %v216
        %474 = vst [vmem:[%s396 + $0x268] sm:$0xff] %v217
        %475 = vst [vmem:[%s396 + $0x270] sm:$0xff] %v218
        %476 = vst [vmem:[%s396 + $0x278] sm:$0xff] %v219
        %477 = vst [vmem:[%s396 + $0x280] sm:$0xff] %v220
        %478 = vst [vmem:[%s396 + $0x288] sm:$0xff] %v221
        %479 = vst [vmem:[%s396 + $0x290] sm:$0xff] %v222
        %480 = vst [vmem:[%s396 + $0x298] sm:$0xff] %v223
        %481 = vst [vmem:[%s396 + $0x2a0] sm:$0xff] %v224
        %482 = vst [vmem:[%s396 + $0x2a8] sm:$0xff] %v225
        %483 = vst [vmem:[%s396 + $0x2b0] sm:$0xff] %v226
        %484 = vst [vmem:[%s396 + $0x2b8] sm:$0xff] %v227
        %485 = vst [vmem:[%s396 + $0x2c0] sm:$0xff] %v228
        %486 = vst [vmem:[%s396 + $0x2c8] sm:$0xff] %v229
        %487 = vst [vmem:[%s396 + $0x2d0] sm:$0xff] %v230
        %488 = vst [vmem:[%s396 + $0x2d8] sm:$0xff] %v231
        %489 = vst [vmem:[%s396 + $0x2e0] sm:$0xff] %v232
        %490 = vst [vmem:[%s396 + $0x2e8] sm:$0xff] %v233
        %491 = vst [vmem:[%s396 + $0x2f0] sm:$0xff] %v234
        %492 = vst [vmem:[%s396 + $0x2f8] sm:$0xff] %v235
        %493 = vst [vmem:[%s396 + $0x300] sm:$0xff] %v236
        %494 = vst [vmem:[%s396 + $0x308] sm:$0xff] %v237
        %495 = vst [vmem:[%s396 + $0x310] sm:$0xff] %v238
        %496 = vst [vmem:[%s396 + $0x318] sm:$0xff] %v239
        %497 = vst [vmem:[%s396 + $0x320] sm:$0xff] %v240
        %498 = vst [vmem:[%s396 + $0x328] sm:$0xff] %v241
        %499 = vst [vmem:[%s396 + $0x330] sm:$0xff] %v242
        %500 = vst [vmem:[%s396 + $0x338] sm:$0xff] %v243
        %501 = vst [vmem:[%s396 + $0x340] sm:$0xff] %v244
        %502 = vst [vmem:[%s396 + $0x348] sm:$0xff] %v245
        %503 = vst [vmem:[%s396 + $0x350] sm:$0xff] %v246
        %504 = vst [vmem:[%s396 + $0x358] sm:$0xff] %v247
        %505 = vst [vmem:[%s396 + $0x360] sm:$0xff] %v248
        %506 = vst [vmem:[%s396 + $0x368] sm:$0xff] %v249
        %507 = vst [vmem:[%s396 + $0x370] sm:$0xff] %v250
        %508 = vst [vmem:[%s396 + $0x378] sm:$0xff] %v251
        %509 = vst [vmem:[%s396 + $0x380] sm:$0xff] %v252
        %510 = vst [vmem:[%s396 + $0x388] sm:$0xff] %v253
        %511 = vst [vmem:[%s396 + $0x390] sm:$0xff] %v254
        %512 = vst [vmem:[%s396 + $0x398] sm:$0xff] %v255
        %513 = vst [vmem:[%s396 + $0x3a0] sm:$0xff] %v256
        %514 = vst [vmem:[%s396 + $0x3a8] sm:$0xff] %v257
        %515 = vst [vmem:[%s396 + $0x3b0] sm:$0xff] %v258
        %516 = vst [vmem:[%s396 + $0x3b8] sm:$0xff] %v259
        %517 = vst [vmem:[%s396 + $0x3c0] sm:$0xff] %v260
        %518 = vst [vmem:[%s396 + $0x3c8] sm:$0xff] %v261
        %519 = vst [vmem:[%s396 + $0x3d0] sm:$0xff] %v262
        %520 = vst [vmem:[%s396 + $0x3d8] sm:$0xff] %v263
        %521 = vst [vmem:[%s396 + $0x3e0] sm:$0xff] %v264
        %522 = vst [vmem:[%s396 + $0x3e8] sm:$0xff] %v265
        %523 = vst [vmem:[%s396 + $0x3f0] sm:$0xff] %v266
        %524 = vst [vmem:[%s396 + $0x3f8] sm:$0xff] %v267
        %s525 = sand.u32 %s52, 1
        %s526 = scalar_lea.sflag [#allocation4], %s525
        %s527 = sand.u32 %s52, 1
        %s528 = smul.addr %s527, 2048
        %s529 = scalar_lea.vmem [#allocation5], %s528
        // Predicated region
        $region29: #{tpu_custom_call.1} parent=23 // pred_check
          %p530 = pneg %p62
        $region30: #{tpu_custom_call.1} parent=23 // pred_check_branch
          %532 = sbr.rel (%p530) target = $region32
        $region31: #{tpu_custom_call.1} parent=23 // pred_region
          #allocation7 [shape = 'u32[6]{0}', space=smem, size = 0x18, scoped, tag = 'DMA stride descriptor']
          %s533 = smul.u32 32, %s18
          %535 = vsyncadd %s526, 0
          %s536 = smul.addr %s533, 4
          %s537 = smul.addr %s536, 8
          %s538 = scalar_lea.hbm %s1, %s537
          %s540 = sshll.u32 1, 14
          %s541 = sxor.u32 4294967295, %s540
          %s544 = sshll.u32 7, 18
          %s545 = sxor.u32 4294967295, %s544
          %s546 = sand.u32 0, %s545
          %s548 = sor.u32 %s546, 0
          %s549 = sshll.u32 %s529, 4
          %s550 = int_to_ptr.vmem [resolvable:$true] %s549
          %s551 = sshll.u32 %s538, 4
          %s552 = int_to_ptr.hbm [resolvable:$true] %s551
          %558 = sst [smem:[#allocation7]] 16384
          %s559 = scalar_lea.smem [#allocation7], 1
          %560 = sst [smem:[%s559]] 65536
          %s561 = scalar_lea.smem [#allocation7], 2
          %562 = sst [smem:[%s561]] 32
          %s563 = scalar_lea.smem [#allocation7], 3
          %564 = sst [smem:[%s563]] 512
          %s565 = scalar_lea.smem [#allocation7], 4
          %566 = sst [smem:[%s565]] 512
          %s567 = scalar_lea.smem [#allocation7], 5
          %568 = sst [smem:[%s567]] 32
          %570 = dma.general %s550, 32768, %s552, %s526, [#allocation6], [#allocation7], %s548, 0
        $region32: #{tpu_custom_call.1} parent=23 // pred_fallthru
          _
      $region24: #{tpu_custom_call.1} parent=5 // pred_fallthru
        _
      %p571 = scmp.le.s32.totalorder 2, %s13
      // Predicated region
      $region33: #{tpu_custom_call.1} parent=5 // pred_check
        %p572 = pneg %p571
      $region34: #{tpu_custom_call.1} parent=5 // pred_check_branch
        %574 = sbr.rel (%p572) target = $region36
      $region35: #{tpu_custom_call.1} parent=5 // pred_region
        %s575 = ssub.s32 %s13, 2
        // Predicated region
        $region37: #{tpu_custom_call.1} parent=35 // pred_check
          %p576 = pneg %p68
        $region38: #{tpu_custom_call.1} parent=35 // pred_check_branch
          %578 = sbr.rel (%p576) target = $region40
        $region39: #{tpu_custom_call.1} parent=35 // pred_region
          %s579 = sand.u32 %s53, 1
          %s580 = scalar_lea.sflag [#allocation4], %s579
          %s581 = sand.u32 %s53, 1
          %s582 = smul.addr %s581, 2048
          %s583 = scalar_lea.vmem [#allocation5], %s582
          %585 = dma.done %s580, 32768
        $region40: #{tpu_custom_call.1} parent=35 // pred_fallthru
          _
      $region36: #{tpu_custom_call.1} parent=5 // pred_fallthru
        _
    $region6: #{tpu_custom_call.1} parent=1 // loop_footer
      %s17 = sadd.s32 1, %s13
    $region7: #{tpu_custom_call.1} parent=1 // loop_footer_branch
      %12 = sbr.rel target = $region3
    $region8: #{tpu_custom_call.1} parent=1 // loop_exit
      _
    %586 = vsyncpa [#allocation3], 1
    %s587 = scalar_lea.sflag [#allocation3], 1
    %588 = vsyncpa %s587, 1
    %589 = vsyncpa [#allocation4], 1
    %s590 = scalar_lea.sflag [#allocation4], 1
    %591 = vsyncpa %s590, 1

</llo_original>
